<compile_context>
chip_gen: v7x
topology: tpu7x:2x2x1
jax: 0.10.0
libtpu: 0.0.40
codegen_flags: <defaults>
</compile_context>

<pallas_src>
import jax
import jax.numpy as jnp
import numpy as np
from jax import lax
from jax.experimental import pallas as pl
from jax.experimental.pallas import tpu as pltpu


def _smooth_loss_kernel(disp_ref, img_ref, out_x_ref, out_y_ref,
                        dcarry_ref, icarry_ref):
    h = pl.program_id(2)
    sl = out_x_ref.shape[0]          # partial-sum sublane granularity (8 or 1)

    disp_raw = disp_ref[...]                                  # (Cd, TH, W)
    img_raw = img_ref[...]                                    # (Ci, TH, W)
    disp = disp_raw.astype(jnp.float32)
    img = img_raw.astype(jnp.float32)
    _, th, w = disp.shape

    d0 = disp[:, 0:1, :]                                      # (Cd, 1, W)
    i0 = img[:, 0:1, :]                                       # (Ci, 1, W)
    d_last = disp[:, th - 1:th, :]                            # (Cd, 1, W)
    i_last = img[:, th - 1:th, :]                             # (Ci, 1, W)

    @pl.when(h == 0)
    def _():
        # New (batch, H-group): zero the resident accumulators and seed the
        # halo carry with this tile's row 0 so the row-0 correction below is
        # exactly zero (matches the reference: no gradient above row 0).
        out_x_ref[...] = jnp.zeros_like(out_x_ref)
        out_y_ref[...] = jnp.zeros_like(out_y_ref)
        dcarry_ref[...] = d0
        icarry_ref[...] = i0

    # ---- x direction: gradient between column c and c-1 (lane roll) ------
    prev_d_x = pltpu.roll(disp_raw, 1, 2).astype(jnp.float32)
    prev_i_x = pltpu.roll(img_raw, 1, 2).astype(jnp.float32)
    gdx = jnp.abs(disp - prev_d_x)
    gix = jnp.mean(jnp.abs(img - prev_i_x), axis=0, keepdims=True)
    wx = gdx * jnp.exp(-gix)
    # Column 0 (wrapped to W-1) is bogus, but it only ever lands in lane 0
    # of the partial sum; the wrapper drops lane 0, so no mask is needed.

    # ---- y direction: gradient between row r and r-1 (sublane roll) ------
    prev_d_y = pltpu.roll(disp_raw, 1, 1).astype(jnp.float32)
    prev_i_y = pltpu.roll(img_raw, 1, 1).astype(jnp.float32)
    gdy = jnp.abs(disp - prev_d_y)
    giy = jnp.mean(jnp.abs(img - prev_i_y), axis=0, keepdims=True)
    wy = gdy * jnp.exp(-giy)
    # Row 0 of wy pairs with row TH-1 of this tile (wrapped) -> bogus.
    # Fix only the (1, W) partial: remove the bogus term, add the true one
    # computed against the carried halo (last row of the previous tile).
    bogus = (jnp.sum(jnp.abs(d0 - d_last), axis=0) *
             jnp.exp(-jnp.mean(jnp.abs(i0 - i_last), axis=0)))        # (1, W)
    true0 = (jnp.sum(jnp.abs(d0 - dcarry_ref[...]), axis=0) *
             jnp.exp(-jnp.mean(jnp.abs(i0 - icarry_ref[...]), axis=0)))  # (1, W)
    corr = true0 - bogus                                              # (1, W)

    # Carry this tile's last row forward for the next H tile.
    dcarry_ref[...] = d_last
    icarry_ref[...] = i_last

    # Lane/sublane-aligned partial sums: reduce (C, TH, W) -> (sl, W) with
    # plain VALU adds (layout-preserving reshape, no cross-sublane XLU
    # reduce); the wrapper finishes the reduction + normalization.
    def _partial(x):
        c, t, ww = x.shape
        return jnp.sum(x.reshape((c * t) // sl, sl, ww), axis=0)

    px = _partial(wx)                                                 # (sl, W)
    py = _partial(wy)                                                 # (sl, W)
    row0 = lax.broadcasted_iota(jnp.int32, (sl, w), 0) == 0
    py = py + jnp.where(row0, corr, 0.0)

    out_x_ref[...] += px
    out_y_ref[...] += py


def _vmem_plan_bytes():
    """Scoped-VMEM limit: ~75% of physical per-core VMEM (48 MiB on v7x's
    64 MiB/TC, 96 MiB on v5e/v6e's 128 MiB), capped at 100 MiB."""
    cap = 64 * 1024 * 1024
    try:
        info = pltpu.get_tpu_info()
        cap = int(getattr(info, "vmem_capacity_bytes", cap))
    except Exception:
        pass
    return min((cap * 3) // 4, 100 * 1024 * 1024)


def _choose_tile_h(H, Cd, Ci, W, disp_dtype, img_dtype, vmem_limit):
    """Largest multiple-of-8 H tile that divides H and keeps the
    double-buffered input tiles plus the ~4 live f32 temporaries per input
    element comfortably inside the VMEM plan."""
    if H % 8 != 0:
        return H                      # full-H block is always legal
    in_bytes_per_row = (Cd * np.dtype(disp_dtype).itemsize +
                        Ci * np.dtype(img_dtype).itemsize) * W
    tmp_bytes_per_row = 4 * (Cd + Ci) * W * 4        # f32 intermediates
    bytes_per_row = 2 * in_bytes_per_row + tmp_bytes_per_row
    budget = int(vmem_limit * 0.6)                   # headroom for scratch/etc.
    max_rows = max(8, budget // max(bytes_per_row, 1))
    th = min(H, (max_rows // 8) * 8, 2048)
    th = max(th, 8)
    while th > 8 and H % th != 0:
        th -= 8
    return th


def smooth_loss(disp, img, *, tile_h=None):
    """disp: (B, Cd, H, W), img: (B, Ci, H, W) -> scalar loss (f32).
    bf16 inputs are supported (the kernel upcasts to f32 for the math)."""
    B, Cd, H, W = disp.shape
    Bi, Ci, Hi, Wi = img.shape
    assert (B, H, W) == (Bi, Hi, Wi), "disp/img batch+spatial dims must match"
    assert H >= 2 and W >= 2, "SmoothLoss needs at least 2 rows and 2 cols"

    vmem_limit = _vmem_plan_bytes()
    if tile_h is None:
        tile_h = _choose_tile_h(H, Cd, Ci, W, disp.dtype, img.dtype, vmem_limit)
    assert H % tile_h == 0, "tile_h must divide H"
    assert tile_h == H or tile_h % 8 == 0, "tile_h must be a multiple of 8 or H"
    nt = H // tile_h

    # >=2-way work on the parallel axes so both v7x TensorCores are busy even
    # for single-image (per-scale) calls: split H into two serial groups.
    P = 2 if (B == 1 and nt >= 2 and nt % 2 == 0) else 1
    nperg = nt // P

    SL = 8 if tile_h % 8 == 0 else 1   # sublane granularity of the partials

    partial_x, partial_y = pl.pallas_call(
        _smooth_loss_kernel,
        out_shape=(jax.ShapeDtypeStruct((B, P, SL, W), jnp.float32),
                   jax.ShapeDtypeStruct((B, P, SL, W), jnp.float32)),
        grid=(B, P, nperg),
        in_specs=[
            pl.BlockSpec((None, Cd, tile_h, W),
                         lambda b, p, h: (b, 0, p * nperg + h, 0)),
            pl.BlockSpec((None, Ci, tile_h, W),
                         lambda b, p, h: (b, 0, p * nperg + h, 0)),
        ],
        out_specs=(
            pl.BlockSpec((None, None, SL, W), lambda b, p, h: (b, p, 0, 0)),
            pl.BlockSpec((None, None, SL, W), lambda b, p, h: (b, p, 0, 0)),
        ),
        scratch_shapes=[
            pltpu.VMEM((Cd, 1, W), jnp.float32),   # last disp row of prev tile
            pltpu.VMEM((Ci, 1, W), jnp.float32),   # last img row of prev tile
        ],
        compiler_params=pltpu.CompilerParams(
            # batch & H-group: megacore-parallel (private accumulators/carry);
            # H within a group: serial (required by the 1-row halo carry).
            dimension_semantics=("parallel", "parallel", "arbitrary"),
            vmem_limit_bytes=vmem_limit),
    )(disp, img)

    # Lane 0 of the x partial holds only the wrapped column-0 garbage -> drop.
    sum_x = jnp.sum(partial_x[..., 1:])
    sum_y = jnp.sum(partial_y)

    # Seam rows between megacore H-groups contribute zero in-kernel; patch
    # them here with a tiny slice computation.
    if P > 1:
        seam = jnp.asarray([g * nperg * tile_h for g in range(1, P)])
        d_lo = disp[:, :, seam - 1, :].astype(jnp.float32)
        d_hi = disp[:, :, seam, :].astype(jnp.float32)
        i_lo = img[:, :, seam - 1, :].astype(jnp.float32)
        i_hi = img[:, :, seam, :].astype(jnp.float32)
        gdy = jnp.abs(d_hi - d_lo)
        giy = jnp.mean(jnp.abs(i_hi - i_lo), axis=1, keepdims=True)
        sum_y = sum_y + jnp.sum(gdy * jnp.exp(-giy))

    count_x = float(B * Cd * H * (W - 1))
    count_y = float(B * Cd * (H - 1) * W)
    return sum_x / count_x + sum_y / count_y


def smooth_loss_ref(disp, img):
    """Pure-JAX reference (mirrors the PyTorch forward exactly)."""
    grad_disp_x = jnp.abs(disp[:, :, :, :-1] - disp[:, :, :, 1:])
    grad_disp_y = jnp.abs(disp[:, :, :-1, :] - disp[:, :, 1:, :])
    grad_img_x = jnp.mean(jnp.abs(img[:, :, :, :-1] - img[:, :, :, 1:]),
                          axis=1, keepdims=True)
    grad_img_y = jnp.mean(jnp.abs(img[:, :, :-1, :] - img[:, :, 1:, :]),
                          axis=1, keepdims=True)
    grad_disp_x = grad_disp_x * jnp.exp(-grad_img_x)
    grad_disp_y = grad_disp_y * jnp.exp(-grad_img_y)
    return grad_disp_x.mean() + grad_disp_y.mean()


if __name__ == "__main__":
    key = jax.random.PRNGKey(0)
    k1, k2, k3, k4 = jax.random.split(key, 4)

    # Case 1: B=2 (batch axis provides the parallel work); tile_h=8 < H
    # exercises the halo carry and output-resident accumulation.
    B, Cd, Ci, H, W = 2, 1, 3, 16, 128
    disp = jax.nn.sigmoid(jax.random.normal(k1, (B, Cd, H, W), jnp.float32))
    img = jax.random.uniform(k2, (B, Ci, H, W), jnp.float32)
    loss = jax.block_until_ready(smooth_loss(disp, img, tile_h=8))
    ref = jax.block_until_ready(smooth_loss_ref(disp, img))
    np.testing.assert_allclose(np.asarray(loss), np.asarray(ref),
                               rtol=5e-5, atol=1e-6)

    # Case 2: B=1 — exercises the 2-way H-group split (both v7x TensorCores)
    # and the wrapper-side seam correction.
    B2, H2 = 1, 32
    disp2 = jax.nn.sigmoid(jax.random.normal(k3, (B2, Cd, H2, W), jnp.float32))
    img2 = jax.random.uniform(k4, (B2, Ci, H2, W), jnp.float32)
    loss2 = jax.block_until_ready(smooth_loss(disp2, img2, tile_h=8))
    ref2 = jax.block_until_ready(smooth_loss_ref(disp2, img2))
    np.testing.assert_allclose(np.asarray(loss2), np.asarray(ref2),
                               rtol=5e-5, atol=1e-6)

    print("KERNEL_OK")
</pallas_src>

<mosaic_0001>
module attributes {stable_mosaic.version = 11 : i64} {
  func.func @_smooth_loss_kernel(%arg0: i32, %arg1: i32, %arg2: i32, %arg3: memref<1x1x8x128xf32, #tpu.memory_space<vmem>>, %arg4: memref<1x3x8x128xf32, #tpu.memory_space<vmem>>, %arg5: memref<1x1x8x128xf32, #tpu.memory_space<vmem>>, %arg6: memref<1x1x8x128xf32, #tpu.memory_space<vmem>>, %arg7: memref<1x1x128xf32, #tpu.memory_space<vmem>>, %arg8: memref<3x1x128xf32, #tpu.memory_space<vmem>>) attributes {dimension_semantics = [#tpu.dimension_semantics<parallel>, #tpu.dimension_semantics<parallel>, #tpu.dimension_semantics<arbitrary>], iteration_bounds = array<i64: 2, 1, 2>, scalar_prefetch = 0 : i64, scratch_operands = 2 : i64, tpu.core_type = #tpu.core_type<tc>, window_params = [{transform_indices = @transform_0, window_bounds = array<i64: 1, 1, 8, 128>}, {transform_indices = @transform_1, window_bounds = array<i64: 1, 3, 8, 128>}, {transform_indices = @transform_2, window_bounds = array<i64: 1, 1, 8, 128>}, {transform_indices = @transform_3, window_bounds = array<i64: 1, 1, 8, 128>}]} {
    %c0 = arith.constant 0 : index
    %c0_0 = arith.constant 0 : index
    %c0_1 = arith.constant 0 : index
    %c0_2 = arith.constant 0 : index
    %0 = vector.load %arg3[%c0, %c0_0, %c0_1, %c0_2] : memref<1x1x8x128xf32, #tpu.memory_space<vmem>>, vector<1x1x8x128xf32>
    %1 = vector.shape_cast %0 : vector<1x1x8x128xf32> to vector<1x8x128xf32>
    %c0_3 = arith.constant 0 : index
    %c0_4 = arith.constant 0 : index
    %c0_5 = arith.constant 0 : index
    %c0_6 = arith.constant 0 : index
    %2 = vector.load %arg4[%c0_3, %c0_4, %c0_5, %c0_6] : memref<1x3x8x128xf32, #tpu.memory_space<vmem>>, vector<1x3x8x128xf32>
    %3 = vector.shape_cast %2 : vector<1x3x8x128xf32> to vector<3x8x128xf32>
    %4 = vector.extract_strided_slice %1 {offsets = [0, 0, 0], sizes = [1, 1, 128], strides = [1, 1, 1]} : vector<1x8x128xf32> to vector<1x1x128xf32>
    %5 = vector.extract_strided_slice %3 {offsets = [0, 0, 0], sizes = [3, 1, 128], strides = [1, 1, 1]} : vector<3x8x128xf32> to vector<3x1x128xf32>
    %6 = vector.extract_strided_slice %1 {offsets = [0, 7, 0], sizes = [1, 1, 128], strides = [1, 1, 1]} : vector<1x8x128xf32> to vector<1x1x128xf32>
    %7 = vector.extract_strided_slice %3 {offsets = [0, 7, 0], sizes = [3, 1, 128], strides = [1, 1, 1]} : vector<3x8x128xf32> to vector<3x1x128xf32>
    %c0_i32 = arith.constant 0 : i32
    %8 = arith.cmpi eq, %arg2, %c0_i32 : i32
    %9 = arith.extui %8 : i1 to i32
    %c0_i32_7 = arith.constant 0 : i32
    %10 = arith.cmpi ne, %9, %c0_i32_7 : i32
    scf.if %10 {
      %cst_56 = arith.constant 0.000000e+00 : f32
      %90 = vector.broadcast %cst_56 : f32 to vector<8x128xf32>
      %c0_57 = arith.constant 0 : index
      %c0_58 = arith.constant 0 : index
      %c0_59 = arith.constant 0 : index
      %c0_60 = arith.constant 0 : index
      %91 = vector.load %arg5[%c0_57, %c0_58, %c0_59, %c0_60] : memref<1x1x8x128xf32, #tpu.memory_space<vmem>>, vector<1x1x8x128xf32>
      %92 = vector.shape_cast %91 : vector<1x1x8x128xf32> to vector<8x128xf32>
      %93 = vector.shape_cast %90 : vector<8x128xf32> to vector<1x1x8x128xf32>
      tpu.vector_store %arg5[%c0_57, %c0_58, %c0_59, %c0_60], %93 {strides = array<i32>} : memref<1x1x8x128xf32, #tpu.memory_space<vmem>>, vector<1x1x8x128xf32>,
      %cst_61 = arith.constant 0.000000e+00 : f32
      %94 = vector.broadcast %cst_61 : f32 to vector<8x128xf32>
      %c0_62 = arith.constant 0 : index
      %c0_63 = arith.constant 0 : index
      %c0_64 = arith.constant 0 : index
      %c0_65 = arith.constant 0 : index
      %95 = vector.load %arg6[%c0_62, %c0_63, %c0_64, %c0_65] : memref<1x1x8x128xf32, #tpu.memory_space<vmem>>, vector<1x1x8x128xf32>
      %96 = vector.shape_cast %95 : vector<1x1x8x128xf32> to vector<8x128xf32>
      %97 = vector.shape_cast %94 : vector<8x128xf32> to vector<1x1x8x128xf32>
      tpu.vector_store %arg6[%c0_62, %c0_63, %c0_64, %c0_65], %97 {strides = array<i32>} : memref<1x1x8x128xf32, #tpu.memory_space<vmem>>, vector<1x1x8x128xf32>,
      %c0_66 = arith.constant 0 : index
      %c0_67 = arith.constant 0 : index
      %c0_68 = arith.constant 0 : index
      %98 = vector.load %arg7[%c0_66, %c0_67, %c0_68] : memref<1x1x128xf32, #tpu.memory_space<vmem>>, vector<1x1x128xf32>
      tpu.vector_store %arg7[%c0_66, %c0_67, %c0_68], %4 {strides = array<i32>} : memref<1x1x128xf32, #tpu.memory_space<vmem>>, vector<1x1x128xf32>,
      %c0_69 = arith.constant 0 : index
      %c0_70 = arith.constant 0 : index
      %c0_71 = arith.constant 0 : index
      %99 = vector.load %arg8[%c0_69, %c0_70, %c0_71] : memref<3x1x128xf32, #tpu.memory_space<vmem>>, vector<3x1x128xf32>
      tpu.vector_store %arg8[%c0_69, %c0_70, %c0_71], %5 {strides = array<i32>} : memref<3x1x128xf32, #tpu.memory_space<vmem>>, vector<3x1x128xf32>,
    } else {
    }
    %c1_i32 = arith.constant 1 : i32
    %11 = tpu.dynamic_rotate %1 by %c1_i32 dim 2 : vector<1x8x128xf32>, i32 -> vector<1x8x128xf32>
    %c1_i32_8 = arith.constant 1 : i32
    %12 = tpu.dynamic_rotate %3 by %c1_i32_8 dim 2 : vector<3x8x128xf32>, i32 -> vector<3x8x128xf32>
    %13 = arith.subf %1, %11 : vector<1x8x128xf32>
    %14 = math.absf %13 : vector<1x8x128xf32>
    %15 = arith.subf %3, %12 : vector<3x8x128xf32>
    %16 = math.absf %15 : vector<3x8x128xf32>
    %cst = arith.constant dense<0.000000e+00> : vector<8x128xf32>
    %17 = vector.multi_reduction <add>, %16, %cst [0] : vector<3x8x128xf32> to vector<8x128xf32>
    %18 = vector.shape_cast %17 : vector<8x128xf32> to vector<1x8x128xf32>
    %cst_9 = arith.constant 3.000000e+00 : f32
    %19 = vector.broadcast %cst_9 : f32 to vector<1x8x128xf32>
    %20 = arith.divf %18, %19 : vector<1x8x128xf32>
    %cst_10 = arith.constant 0.000000e+00 : f32
    %21 = vector.broadcast %cst_10 : f32 to vector<1x8x128xf32>
    %22 = arith.subf %21, %20 : vector<1x8x128xf32>
    %23 = math.exp %22 : vector<1x8x128xf32>
    %24 = arith.mulf %14, %23 : vector<1x8x128xf32>
    %c1_i32_11 = arith.constant 1 : i32
    %25 = tpu.dynamic_rotate %1 by %c1_i32_11 dim 1 : vector<1x8x128xf32>, i32 -> vector<1x8x128xf32>
    %c1_i32_12 = arith.constant 1 : i32
    %26 = tpu.dynamic_rotate %3 by %c1_i32_12 dim 1 : vector<3x8x128xf32>, i32 -> vector<3x8x128xf32>
    %27 = arith.subf %1, %25 : vector<1x8x128xf32>
    %28 = math.absf %27 : vector<1x8x128xf32>
    %29 = arith.subf %3, %26 : vector<3x8x128xf32>
    %30 = math.absf %29 : vector<3x8x128xf32>
    %cst_13 = arith.constant dense<0.000000e+00> : vector<8x128xf32>
    %31 = vector.multi_reduction <add>, %30, %cst_13 [0] : vector<3x8x128xf32> to vector<8x128xf32>
    %32 = vector.shape_cast %31 : vector<8x128xf32> to vector<1x8x128xf32>
    %cst_14 = arith.constant 3.000000e+00 : f32
    %33 = vector.broadcast %cst_14 : f32 to vector<1x8x128xf32>
    %34 = arith.divf %32, %33 : vector<1x8x128xf32>
    %cst_15 = arith.constant 0.000000e+00 : f32
    %35 = vector.broadcast %cst_15 : f32 to vector<1x8x128xf32>
    %36 = arith.subf %35, %34 : vector<1x8x128xf32>
    %37 = math.exp %36 : vector<1x8x128xf32>
    %38 = arith.mulf %28, %37 : vector<1x8x128xf32>
    %39 = arith.subf %4, %6 : vector<1x1x128xf32>
    %40 = math.absf %39 : vector<1x1x128xf32>
    %cst_16 = arith.constant dense<0.000000e+00> : vector<1x128xf32>
    %41 = vector.multi_reduction <add>, %40, %cst_16 [0] : vector<1x1x128xf32> to vector<1x128xf32>
    %42 = arith.subf %5, %7 : vector<3x1x128xf32>
    %43 = math.absf %42 : vector<3x1x128xf32>
    %cst_17 = arith.constant dense<0.000000e+00> : vector<1x128xf32>
    %44 = vector.multi_reduction <add>, %43, %cst_17 [0] : vector<3x1x128xf32> to vector<1x128xf32>
    %cst_18 = arith.constant 3.000000e+00 : f32
    %45 = vector.broadcast %cst_18 : f32 to vector<1x128xf32>
    %46 = arith.divf %44, %45 : vector<1x128xf32>
    %cst_19 = arith.constant 0.000000e+00 : f32
    %47 = vector.broadcast %cst_19 : f32 to vector<1x128xf32>
    %48 = arith.subf %47, %46 : vector<1x128xf32>
    %49 = math.exp %48 : vector<1x128xf32>
    %50 = arith.mulf %41, %49 : vector<1x128xf32>
    %c0_20 = arith.constant 0 : index
    %c0_21 = arith.constant 0 : index
    %c0_22 = arith.constant 0 : index
    %51 = vector.load %arg7[%c0_20, %c0_21, %c0_22] : memref<1x1x128xf32, #tpu.memory_space<vmem>>, vector<1x1x128xf32>
    %52 = arith.subf %4, %51 : vector<1x1x128xf32>
    %53 = math.absf %52 : vector<1x1x128xf32>
    %cst_23 = arith.constant dense<0.000000e+00> : vector<1x128xf32>
    %54 = vector.multi_reduction <add>, %53, %cst_23 [0] : vector<1x1x128xf32> to vector<1x128xf32>
    %c0_24 = arith.constant 0 : index
    %c0_25 = arith.constant 0 : index
    %c0_26 = arith.constant 0 : index
    %55 = vector.load %arg8[%c0_24, %c0_25, %c0_26] : memref<3x1x128xf32, #tpu.memory_space<vmem>>, vector<3x1x128xf32>
    %56 = arith.subf %5, %55 : vector<3x1x128xf32>
    %57 = math.absf %56 : vector<3x1x128xf32>
    %cst_27 = arith.constant dense<0.000000e+00> : vector<1x128xf32>
    %58 = vector.multi_reduction <add>, %57, %cst_27 [0] : vector<3x1x128xf32> to vector<1x128xf32>
    %cst_28 = arith.constant 3.000000e+00 : f32
    %59 = vector.broadcast %cst_28 : f32 to vector<1x128xf32>
    %60 = arith.divf %58, %59 : vector<1x128xf32>
    %cst_29 = arith.constant 0.000000e+00 : f32
    %61 = vector.broadcast %cst_29 : f32 to vector<1x128xf32>
    %62 = arith.subf %61, %60 : vector<1x128xf32>
    %63 = math.exp %62 : vector<1x128xf32>
    %64 = arith.mulf %54, %63 : vector<1x128xf32>
    %65 = arith.subf %64, %50 : vector<1x128xf32>
    %c0_30 = arith.constant 0 : index
    %c0_31 = arith.constant 0 : index
    %c0_32 = arith.constant 0 : index
    %66 = vector.load %arg7[%c0_30, %c0_31, %c0_32] : memref<1x1x128xf32, #tpu.memory_space<vmem>>, vector<1x1x128xf32>
    tpu.vector_store %arg7[%c0_30, %c0_31, %c0_32], %6 {strides = array<i32>} : memref<1x1x128xf32, #tpu.memory_space<vmem>>, vector<1x1x128xf32>,
    %c0_33 = arith.constant 0 : index
    %c0_34 = arith.constant 0 : index
    %c0_35 = arith.constant 0 : index
    %67 = vector.load %arg8[%c0_33, %c0_34, %c0_35] : memref<3x1x128xf32, #tpu.memory_space<vmem>>, vector<3x1x128xf32>
    tpu.vector_store %arg8[%c0_33, %c0_34, %c0_35], %7 {strides = array<i32>} : memref<3x1x128xf32, #tpu.memory_space<vmem>>, vector<3x1x128xf32>,
    %cst_36 = arith.constant dense<0.000000e+00> : vector<8x128xf32>
    %68 = vector.multi_reduction <add>, %24, %cst_36 [0] : vector<1x8x128xf32> to vector<8x128xf32>
    %cst_37 = arith.constant dense<0.000000e+00> : vector<8x128xf32>
    %69 = vector.multi_reduction <add>, %38, %cst_37 [0] : vector<1x8x128xf32> to vector<8x128xf32>
    %70 = tpu.iota {dimensions = array<i32: 0>} : vector<8x128xi32>
    %c0_i32_38 = arith.constant 0 : i32
    %71 = vector.broadcast %c0_i32_38 : i32 to vector<8x128xi32>
    %72 = arith.cmpi eq, %70, %71 : vector<8x128xi32>
    %cst_39 = arith.constant 0.000000e+00 : f32
    %73 = vector.shape_cast %65 : vector<1x128xf32> to vector<1x128xf32>
    %74 = vector.broadcast %73 : vector<1x128xf32> to vector<8x128xf32>
    %75 = vector.broadcast %cst_39 : f32 to vector<8x128xf32>
    %76 = arith.select %72, %74, %75 : vector<8x128xi1>, vector<8x128xf32>
    %77 = arith.addf %69, %76 : vector<8x128xf32>
    %c0_40 = arith.constant 0 : index
    %c0_41 = arith.constant 0 : index
    %c0_42 = arith.constant 0 : index
    %c0_43 = arith.constant 0 : index
    %78 = vector.load %arg5[%c0_40, %c0_41, %c0_42, %c0_43] : memref<1x1x8x128xf32, #tpu.memory_space<vmem>>, vector<1x1x8x128xf32>
    %79 = vector.shape_cast %78 : vector<1x1x8x128xf32> to vector<8x128xf32>
    %80 = arith.addf %79, %68 : vector<8x128xf32>
    %c0_44 = arith.constant 0 : index
    %c0_45 = arith.constant 0 : index
    %c0_46 = arith.constant 0 : index
    %c0_47 = arith.constant 0 : index
    %81 = vector.load %arg5[%c0_44, %c0_45, %c0_46, %c0_47] : memref<1x1x8x128xf32, #tpu.memory_space<vmem>>, vector<1x1x8x128xf32>
    %82 = vector.shape_cast %81 : vector<1x1x8x128xf32> to vector<8x128xf32>
    %83 = vector.shape_cast %80 : vector<8x128xf32> to vector<1x1x8x128xf32>
    tpu.vector_store %arg5[%c0_44, %c0_45, %c0_46, %c0_47], %83 {strides = array<i32>} : memref<1x1x8x128xf32, #tpu.memory_space<vmem>>, vector<1x1x8x128xf32>,
    %c0_48 = arith.constant 0 : index
    %c0_49 = arith.constant 0 : index
    %c0_50 = arith.constant 0 : index
    %c0_51 = arith.constant 0 : index
    %84 = vector.load %arg6[%c0_48, %c0_49, %c0_50, %c0_51] : memref<1x1x8x128xf32, #tpu.memory_space<vmem>>, vector<1x1x8x128xf32>
    %85 = vector.shape_cast %84 : vector<1x1x8x128xf32> to vector<8x128xf32>
    %86 = arith.addf %85, %77 : vector<8x128xf32>
    %c0_52 = arith.constant 0 : index
    %c0_53 = arith.constant 0 : index
    %c0_54 = arith.constant 0 : index
    %c0_55 = arith.constant 0 : index
    %87 = vector.load %arg6[%c0_52, %c0_53, %c0_54, %c0_55] : memref<1x1x8x128xf32, #tpu.memory_space<vmem>>, vector<1x1x8x128xf32>
    %88 = vector.shape_cast %87 : vector<1x1x8x128xf32> to vector<8x128xf32>
    %89 = vector.shape_cast %86 : vector<8x128xf32> to vector<1x1x8x128xf32>
    tpu.vector_store %arg6[%c0_52, %c0_53, %c0_54, %c0_55], %89 {strides = array<i32>} : memref<1x1x8x128xf32, #tpu.memory_space<vmem>>, vector<1x1x8x128xf32>,
    return
  }
  func.func @transform_0(%arg0: i32, %arg1: i32, %arg2: i32) -> (i32, i32, i32, i32) {
    %c2_i32 = arith.constant 2 : i32
    %0 = arith.muli %arg1, %c2_i32 : i32
    %1 = arith.addi %0, %arg2 : i32
    %c0_i32 = arith.constant 0 : i32
    %c0_i32_0 = arith.constant 0 : i32
    %c0_i32_1 = arith.constant 0 : i32
    return %arg0, %c0_i32, %1, %c0_i32_0 : i32, i32, i32, i32
  }
  func.func @transform_1(%arg0: i32, %arg1: i32, %arg2: i32) -> (i32, i32, i32, i32) {
    %c2_i32 = arith.constant 2 : i32
    %0 = arith.muli %arg1, %c2_i32 : i32
    %1 = arith.addi %0, %arg2 : i32
    %c0_i32 = arith.constant 0 : i32
    %c0_i32_0 = arith.constant 0 : i32
    %c0_i32_1 = arith.constant 0 : i32
    return %arg0, %c0_i32, %1, %c0_i32_0 : i32, i32, i32, i32
  }
  func.func @transform_2(%arg0: i32, %arg1: i32, %arg2: i32) -> (i32, i32, i32, i32) {
    %c0_i32 = arith.constant 0 : i32
    %c0_i32_0 = arith.constant 0 : i32
    %c0_i32_1 = arith.constant 0 : i32
    return %arg0, %arg1, %c0_i32, %c0_i32_0 : i32, i32, i32, i32
  }
  func.func @transform_3(%arg0: i32, %arg1: i32, %arg2: i32) -> (i32, i32, i32, i32) {
    %c0_i32 = arith.constant 0 : i32
    %c0_i32_0 = arith.constant 0 : i32
    %c0_i32_1 = arith.constant 0 : i32
    return %arg0, %arg1, %c0_i32, %c0_i32_0 : i32, i32, i32, i32
  }
}

</mosaic_0001>

<llo_original>
// kernel: tpu_custom_call.1
$region0: #{tpu_custom_call.1}
  #allocation0 [shape = 'u32[]', space=smem, size = 0x4, offset = 0x4, fixed_abs, tag = 'smem constant byte address 0x4 - core index']
  #allocation1 [shape = 'u32[144,128]{1,0:T(1,128)}', space=vmem, size = 0x12000, scoped, tag = 'internal scratch']
  #allocation2 [shape = 'f32[1,1,128]{2,1,0:T(1,128)}', space=vmem, size = 0x200, scoped, tag = 'scratch operand']
  #allocation3 [shape = 'f32[3,1,128]{2,1,0:T(1,128)}', space=vmem, size = 0x600, scoped, tag = 'scratch operand']
  %s0 = inlined_call_operand.hbm [shape: f32[2,1,16,128], index: 0, kind: input, shape index: {}]
  %s1 = inlined_call_operand.hbm [shape: f32[2,3,16,128], index: 1, kind: input, shape index: {}]
  %s2 = inlined_call_operand.hbm [shape: f32[2,1,8,128], index: 2, kind: output, shape index: {0}]
  %s3 = inlined_call_operand.hbm [shape: f32[2,1,8,128], index: 3, kind: output, shape index: {1}]
  %4 = xla_tuple %s2, %s3
  %s5 = sld [smem:[#allocation0]]
  $region61: #{tpu_custom_call.1} parent=0
    _
  %s7 = ssub.s32 1, %s5
  %s8 = scalar_select 0, %s7, %s5
  $region1: #{tpu_custom_call.1} parent=0
    #allocation4 [shape = 'u8[8192]{0}', space=vmem, size = 0x2000, scoped, tag = 'input window, operand 0']
    #allocation5 [shape = 's32[2]{0}', space=sflag, size = 0x8, scoped, tag = 'scoped memory for tpu_custom_call.1']
    #allocation6 [shape = 's32[2]{0}', space=sflag, size = 0x8, scoped, tag = 'scoped memory for tpu_custom_call.1']
    #allocation7 [shape = 'u8[24576]{0}', space=vmem, size = 0x6000, scoped, tag = 'input window, operand 1']
    #allocation8 [shape = 's32[2]{0}', space=sflag, size = 0x8, scoped, tag = 'scoped memory for tpu_custom_call.1']
    #allocation9 [shape = 'u8[8192]{0}', space=vmem, size = 0x2000, scoped, tag = 'output window, operand 0']
    #allocation10 [shape = 'u8[8192]{0}', space=vmem, size = 0x2000, scoped, tag = 'output window, operand 1']
    #allocation11 [shape = 's32[2]{0}', space=sflag, size = 0x8, scoped, tag = 'scoped memory for tpu_custom_call.1']
    %9 = vsyncpa [#allocation5], 0
    %s10 = scalar_lea.sflag [#allocation5], 1
    %11 = vsyncpa %s10, 0
    %12 = vsyncpa [#allocation8], 0
    %s13 = scalar_lea.sflag [#allocation8], 1
    %14 = vsyncpa %s13, 0
    %15 = vsyncpa [#allocation6], 0
    %s16 = scalar_lea.sflag [#allocation6], 1
    %17 = vsyncpa %s16, 0
    %18 = vsyncpa [#allocation11], 0
    %s19 = scalar_lea.sflag [#allocation11], 1
    %20 = vsyncpa %s19, 0
    loop: start=0, step=1, limit=6
    $region2: #{tpu_custom_call.1} parent=1 // loop_pre_header
      _
    $region3: #{tpu_custom_call.1} parent=1 // loop_header
      %s22 = sphi 0, %s26
      %p23 = scmp.ge.s32.totalorder %s22, 6
      %s29 = sphi 0, %s48
      %s30 = sphi 0, %s44
      %s31 = sphi 0, %s40
      %s32 = sphi 0, %s29
      %s33 = sphi 0, %s30
      %s34 = sphi 0, %s31
      %s35 = sphi 0, %s32
      %s36 = sphi 0, %s33
      %s37 = sphi 0, %s34
      %s57 = sphi 0, %s59
      %s60 = sphi 0, %s57
      %s61 = sphi 0, %s60
      %s77 = sphi 0, %s61
      %s89 = sphi 0, %s91
      %s92 = sphi 0, %s89
      %s93 = sphi 0, %s92
      %s109 = sphi 0, %s93
      %s117 = sphi 0, %s119
      %s120 = sphi 0, %s117
      %s121 = sphi 0, %s120
      %s137 = sphi 0, %s121
      %s145 = sphi 0, %s147
      %s148 = sphi 0, %s145
      %s149 = sphi 0, %s148
      %s165 = sphi 0, %s149
    $region4: #{tpu_custom_call.1} parent=1 // loop_header_branch
      %25 = sbr.rel (%p23) target = $region8
    $region5: #{tpu_custom_call.1} parent=1 // loop_body
      %s27 = ssub.s32 %s22, 1
      %s28 = ssub.s32 %s22, 2
      %s38 = sadd.s32 1, %s31
      %p39 = scmp.ge.s32.totalorder %s38, 2
      %s40 = scalar_select %p39, 0, %s38
      %s41 = sadd.s32 1, %s30
      %s42 = scalar_select %p39, %s41, %s30
      %p43 = scmp.ge.s32.totalorder %s42, 1
      %s44 = scalar_select %p43, 0, %s42
      %s45 = sadd.s32 1, %s29
      %s46 = scalar_select %p43, %s45, %s29
      %p47 = scmp.ge.s32.totalorder %s46, 2
      %s48 = scalar_select %p47, 0, %s46
      %s49 = smul.u32 %s30, 2
      %s50 = sadd.s32 %s49, %s31
      %s51 = smul.u32 %s44, 2
      %s52 = sadd.s32 %s51, %s40
      %s53 = ssub.s32 %s29, %s48
      %s54 = ssub.s32 %s50, %s52
      %s55 = sor.u32 %s53, %s54
      %p56 = scmp.eq.s32.totalorder %s55, 0
      %s58 = sadd.s32 %s57, 1
      %s59 = scalar_select %p56, %s57, %s58
      %p62 = pneg %p56
      %p63 = scmp.eq.s32.totalorder %s22, 3
      %p64 = por %p62, %p63
      %p65 = scmp.ne.s32.totalorder %s57, %s60
      %p66 = scmp.eq.s32.totalorder %s22, 0
      %p67 = por %p65, %p66
      %p68 = scmp.ne.s32.totalorder %s57, %s60
      %p69 = scmp.eq.s32.totalorder %s27, 3
      %p70 = por %p68, %p69
      %p71 = scmp.ne.s32.totalorder %s60, %s61
      %p72 = scmp.eq.s32.totalorder %s27, 0
      %p73 = por %p71, %p72
      %p74 = scmp.ne.s32.totalorder %s60, %s61
      %p75 = scmp.eq.s32.totalorder %s28, 3
      %p76 = por %p74, %p75
      %p78 = scmp.ne.s32.totalorder %s61, %s77
      %p79 = scmp.eq.s32.totalorder %s28, 0
      %p80 = por %p78, %p79
      %s81 = smul.u32 %s30, 2
      %s82 = sadd.s32 %s81, %s31
      %s83 = smul.u32 %s44, 2
      %s84 = sadd.s32 %s83, %s40
      %s85 = ssub.s32 %s29, %s48
      %s86 = ssub.s32 %s82, %s84
      %s87 = sor.u32 %s85, %s86
      %p88 = scmp.eq.s32.totalorder %s87, 0
      %s90 = sadd.s32 %s89, 1
      %s91 = scalar_select %p88, %s89, %s90
      %p94 = pneg %p88
      %p95 = scmp.eq.s32.totalorder %s22, 3
      %p96 = por %p94, %p95
      %p97 = scmp.ne.s32.totalorder %s89, %s92
      %p98 = scmp.eq.s32.totalorder %s22, 0
      %p99 = por %p97, %p98
      %p100 = scmp.ne.s32.totalorder %s89, %s92
      %p101 = scmp.eq.s32.totalorder %s27, 3
      %p102 = por %p100, %p101
      %p103 = scmp.ne.s32.totalorder %s92, %s93
      %p104 = scmp.eq.s32.totalorder %s27, 0
      %p105 = por %p103, %p104
      %p106 = scmp.ne.s32.totalorder %s92, %s93
      %p107 = scmp.eq.s32.totalorder %s28, 3
      %p108 = por %p106, %p107
      %p110 = scmp.ne.s32.totalorder %s93, %s109
      %p111 = scmp.eq.s32.totalorder %s28, 0
      %p112 = por %p110, %p111
      %s113 = ssub.s32 %s29, %s48
      %s114 = ssub.s32 %s30, %s44
      %s115 = sor.u32 %s113, %s114
      %p116 = scmp.eq.s32.totalorder %s115, 0
      %s118 = sadd.s32 %s117, 1
      %s119 = scalar_select %p116, %s117, %s118
      %p122 = pneg %p116
      %p123 = scmp.eq.s32.totalorder %s22, 3
      %p124 = por %p122, %p123
      %p125 = scmp.ne.s32.totalorder %s117, %s120
      %p126 = scmp.eq.s32.totalorder %s22, 0
      %p127 = por %p125, %p126
      %p128 = scmp.ne.s32.totalorder %s117, %s120
      %p129 = scmp.eq.s32.totalorder %s27, 3
      %p130 = por %p128, %p129
      %p131 = scmp.ne.s32.totalorder %s120, %s121
      %p132 = scmp.eq.s32.totalorder %s27, 0
      %p133 = por %p131, %p132
      %p134 = scmp.ne.s32.totalorder %s120, %s121
      %p135 = scmp.eq.s32.totalorder %s28, 3
      %p136 = por %p134, %p135
      %p138 = scmp.ne.s32.totalorder %s121, %s137
      %p139 = scmp.eq.s32.totalorder %s28, 0
      %p140 = por %p138, %p139
      %s141 = ssub.s32 %s29, %s48
      %s142 = ssub.s32 %s30, %s44
      %s143 = sor.u32 %s141, %s142
      %p144 = scmp.eq.s32.totalorder %s143, 0
      %s146 = sadd.s32 %s145, 1
      %s147 = scalar_select %p144, %s145, %s146
      %p150 = pneg %p144
      %p151 = scmp.eq.s32.totalorder %s22, 3
      %p152 = por %p150, %p151
      %p153 = scmp.ne.s32.totalorder %s145, %s148
      %p154 = scmp.eq.s32.totalorder %s22, 0
      %p155 = por %p153, %p154
      %p156 = scmp.ne.s32.totalorder %s145, %s148
      %p157 = scmp.eq.s32.totalorder %s27, 3
      %p158 = por %p156, %p157
      %p159 = scmp.ne.s32.totalorder %s148, %s149
      %p160 = scmp.eq.s32.totalorder %s27, 0
      %p161 = por %p159, %p160
      %p162 = scmp.ne.s32.totalorder %s148, %s149
      %p163 = scmp.eq.s32.totalorder %s28, 3
      %p164 = por %p162, %p163
      %p166 = scmp.ne.s32.totalorder %s149, %s165
      %p167 = scmp.eq.s32.totalorder %s28, 0
      %p168 = por %p166, %p167
      %p169 = scmp.le.s32.totalorder 1, %s22
      %p170 = scmp.lt.s32.totalorder %s22, 5
      %p171 = pnand %p169, %p170
      %p172 = pneg %p171
      // Predicated region
      $region9: #{tpu_custom_call.1} parent=5 // pred_check
        _
      $region10: #{tpu_custom_call.1} parent=5 // pred_check_branch
        %174 = sbr.rel (%p171) target = $region12
      $region11: #{tpu_custom_call.1} parent=5 // pred_region
        %s175 = ssub.s32 %s22, 1
      $region12: #{tpu_custom_call.1} parent=5 // pred_fallthru
        _
      %p176 = scmp.lt.s32.totalorder %s22, 4
      // Predicated region
      $region13: #{tpu_custom_call.1} parent=5 // pred_check
        %p177 = pneg %p176
      $region14: #{tpu_custom_call.1} parent=5 // pred_check_branch
        %179 = sbr.rel (%p177) target = $region16
      $region15: #{tpu_custom_call.1} parent=5 // pred_region
        // Predicated region
        $region17: #{tpu_custom_call.1} parent=15 // pred_check
          %p180 = pneg %p67
        $region18: #{tpu_custom_call.1} parent=15 // pred_check_branch
          %182 = sbr.rel (%p180) target = $region20
        $region19: #{tpu_custom_call.1} parent=15 // pred_region
          %s183 = sand.u32 %s57, 1
          %s184 = scalar_lea.sflag [#allocation5], %s183
          %s185 = sand.u32 %s57, 1
          %s186 = smul.addr %s185, 8
          %s187 = scalar_lea.vmem [#allocation4], %s186
          %s188 = smul.u32 %s30, 2
          %s189 = sadd.s32 %s188, %s31
          %s191 = ssub.s32 128, 128
          %192 = vsyncadd %s184, %s191
          %s193 = smul.addr %s29, 2
          %s194 = sadd.s32 %s189, %s193
          %s195 = smul.addr %s194, 128
          %s196 = scalar_lea.hbm %s0, %s195
          %s198 = sshll.u32 %s187, 4
          %s199 = int_to_ptr.vmem [resolvable:$true] %s198
          %201 = dma.hbm_to_vmem [thread:$0]  %s196, 128, %s199, %s184
        $region20: #{tpu_custom_call.1} parent=15 // pred_fallthru
          _
        // Predicated region
        $region21: #{tpu_custom_call.1} parent=15 // pred_check
          %p202 = pneg %p99
        $region22: #{tpu_custom_call.1} parent=15 // pred_check_branch
          %204 = sbr.rel (%p202) target = $region24
        $region23: #{tpu_custom_call.1} parent=15 // pred_region
          %s205 = sand.u32 %s89, 1
          %s206 = scalar_lea.sflag [#allocation8], %s205
          %s207 = sand.u32 %s89, 1
          %s208 = smul.addr %s207, 24
          %s209 = scalar_lea.vmem [#allocation7], %s208
          %s210 = smul.u32 %s30, 2
          %s211 = sadd.s32 %s210, %s31
          %s213 = ssub.s32 384, 384
          %214 = vsyncadd %s206, %s213
          %s215 = smul.addr %s29, 6
          %s216 = sadd.s32 %s211, %s215
          %s217 = smul.addr %s216, 128
          %s218 = scalar_lea.hbm %s1, %s217
          %s219 = sshll.u32 %s209, 4
          %s220 = int_to_ptr.vmem [resolvable:$true] %s219
          %225 = dma.hbm_to_vmem [thread:$0]  %s218, 384, %s220, %s206, 256, 128, 8
        $region24: #{tpu_custom_call.1} parent=15 // pred_fallthru
          _
      $region16: #{tpu_custom_call.1} parent=5 // pred_fallthru
        _
      %p226 = scmp.le.s32.totalorder 1, %s22
      %p227 = scmp.lt.s32.totalorder %s22, 5
      %p228 = pnand %p226, %p227
      %p229 = pneg %p228
      // Predicated region
      $region25: #{tpu_custom_call.1} parent=5 // pred_check
        _
      $region26: #{tpu_custom_call.1} parent=5 // pred_check_branch
        %231 = sbr.rel (%p228) target = $region28
      $region27: #{tpu_custom_call.1} parent=5 // pred_region
        %s232 = ssub.s32 %s22, 1
        %s233 = sand.u32 %s60, 1
        %s234 = scalar_lea.sflag [#allocation5], %s233
        %s235 = sand.u32 %s60, 1
        %s236 = smul.addr %s235, 8
        %s237 = scalar_lea.vmem [#allocation4], %s236
        // Predicated region
        $region29: #{tpu_custom_call.1} parent=27 // pred_check
          %p238 = pneg %p73
        $region30: #{tpu_custom_call.1} parent=27 // pred_check_branch
          %240 = sbr.rel (%p238) target = $region32
        $region31: #{tpu_custom_call.1} parent=27 // pred_region
          %241 = dma.done %s234, 128
        $region32: #{tpu_custom_call.1} parent=27 // pred_fallthru
          _
        %s242 = sand.u32 %s92, 1
        %s243 = scalar_lea.sflag [#allocation8], %s242
        %s244 = sand.u32 %s92, 1
        %s245 = smul.addr %s244, 24
        %s246 = scalar_lea.vmem [#allocation7], %s245
        // Predicated region
        $region33: #{tpu_custom_call.1} parent=27 // pred_check
          %p247 = pneg %p105
        $region34: #{tpu_custom_call.1} parent=27 // pred_check_branch
          %249 = sbr.rel (%p247) target = $region36
        $region35: #{tpu_custom_call.1} parent=27 // pred_region
          %250 = dma.done %s243, 384
        $region36: #{tpu_custom_call.1} parent=27 // pred_fallthru
          _
        %s251 = sand.u32 %s60, 1
        %s252 = scalar_lea.sflag [#allocation5], %s251
        %s253 = sand.u32 %s60, 1
        %s254 = smul.addr %s253, 8
        %s255 = scalar_lea.vmem [#allocation4], %s254
        %p256 = pneg %p73
        %p257 = pneg %p70
        %s258 = sand.u32 %s92, 1
        %s259 = scalar_lea.sflag [#allocation8], %s258
        %s260 = sand.u32 %s92, 1
        %s261 = smul.addr %s260, 24
        %s262 = scalar_lea.vmem [#allocation7], %s261
        %p263 = pneg %p105
        %p264 = pneg %p102
        %p265 = pneg %p133
        %p266 = pneg %p130
        %s267 = sand.u32 %s120, 1
        %s268 = scalar_lea.sflag [#allocation6], %s267
        %s269 = sand.u32 %s120, 1
        %s270 = smul.addr %s269, 8
        %s271 = scalar_lea.vmem [#allocation9], %s270
        %p272 = pneg %p161
        %p273 = pneg %p158
        %s274 = sand.u32 %s148, 1
        %s275 = scalar_lea.sflag [#allocation11], %s274
        %s276 = sand.u32 %s148, 1
        %s277 = smul.addr %s276, 8
        %s278 = scalar_lea.vmem [#allocation10], %s277
        %s279 = smul.u32 %s33, 2
        %s280 = sadd.s32 %s279, %s34
        %s281 = smul.u32 %s33, 2
        %s282 = sadd.s32 %s281, %s34
        %v283 = vld [vmem:[%s237] sm:$0xff]
        %v284 = vld [vmem:[%s246] sm:$0xff]
        %v285 = vld [vmem:[%s246 + $0x8] sm:$0xff]
        %v286 = vld [vmem:[%s246 + $0x10] sm:$0xff]
        %p287 = scmp.eq.s32.totalorder %s34, 0
        // Predicated region
        $region37: #{tpu_custom_call.1} parent=27 // pred_check
          %p288 = pneg %p287
        $region38: #{tpu_custom_call.1} parent=27 // pred_check_branch
          %290 = sbr.rel (%p288) target = $region40
        $region39: #{tpu_custom_call.1} parent=27 // pred_region
          %291 = vst [vmem:[%s271] sm:$0xff] 0.0
          %292 = vst [vmem:[%s278] sm:$0xff] 0.0
          %293 = vst [vmem:[#allocation2] sm:$0x1] %v283
          %294 = vst [vmem:[#allocation3] sm:$0x1] %v284
          %295 = vst [vmem:[#allocation3 + $0x1] sm:$0x1] %v285
          %296 = vst [vmem:[#allocation3 + $0x2] sm:$0x1] %v286
        $region40: #{tpu_custom_call.1} parent=27 // pred_fallthru
          _
        %297 = vrot.lane.b32.xlu0 %v283, 1
        %v298 = vpop.permute.xlu0 %297
        %299 = vrot.lane.b32.xlu0 %v284, 1
        %v300 = vpop.permute.xlu0 %299
        %301 = vrot.lane.b32.xlu0 %v285, 1
        %v302 = vpop.permute.xlu0 %301
        %303 = vrot.lane.b32.xlu0 %v286, 1
        %v304 = vpop.permute.xlu0 %303
        %v305 = vsub.f32 %v283, %v298
        %v306 = vand.u32 2147483647, %v305
        %v307 = vsub.f32 %v284, %v300
        %v308 = vsub.f32 %v285, %v302
        %v309 = vsub.f32 %v286, %v304
        %v310 = vand.u32 2147483647, %v307
        %v311 = vand.u32 2147483647, %v308
        %v312 = vand.u32 2147483647, %v309
        %v313 = vadd.f32 %v310, %v311
        %v314 = vadd.f32 %v313, %v312
        %v315 = vrcp.pop 3.0
        %v316 = vmul.f32 %v314, %v315
        %v317 = vsub.f32 0.0, %v316
        %v318 = vmul.f32 %v317, 1.442695
        %v319 = vpow.pop %v318
        %v320 = vmul.f32 %v306, %v319
        %v321 = vrot.slane %v283, 7
        %v322 = vrot.slane %v284, 7
        %v323 = vrot.slane %v285, 7
        %v324 = vrot.slane %v286, 7
        %v325 = vsub.f32 %v283, %v321
        %v326 = vand.u32 2147483647, %v325
        %v327 = vsub.f32 %v284, %v322
        %v328 = vsub.f32 %v285, %v323
        %v329 = vsub.f32 %v286, %v324
        %v330 = vand.u32 2147483647, %v327
        %v331 = vand.u32 2147483647, %v328
        %v332 = vand.u32 2147483647, %v329
        %v333 = vadd.f32 %v330, %v331
        %v334 = vadd.f32 %v333, %v332
        %v335 = vmul.f32 %v334, %v315
        %v336 = vsub.f32 0.0, %v335
        %v337 = vmul.f32 %v336, 1.442695
        %v338 = vpow.pop %v337
        %v339 = vmul.f32 %v326, %v338
        %v341 = vrot.slane %v283, 7
        %v343 = vsub.f32 %v283, %v341
        %v344 = vand.u32 2147483647, %v343
        %v345 = vadd.f32 %v344, 0.0
        %v349 = vrot.slane %v284, 7
        %v350 = vrot.slane %v285, 7
        %v351 = vrot.slane %v286, 7
        %v355 = vsub.f32 %v284, %v349
        %v356 = vsub.f32 %v285, %v350
        %v357 = vsub.f32 %v286, %v351
        %v358 = vand.u32 2147483647, %v355
        %v359 = vand.u32 2147483647, %v356
        %v360 = vand.u32 2147483647, %v357
        %vm361 = vcmask 1040384
        %v362 = vsel %vm361, %v358, 0.0
        %v363 = vsel %vm361, %v359, 0.0
        %v364 = vadd.f32 %v362, %v363
        %v365 = vsel %vm361, %v360, 0.0
        %v366 = vadd.f32 %v364, %v365
        %v367 = vmul.f32 %v366, %v315
        %v368 = vsub.f32 0.0, %v367
        %v369 = vmul.f32 %v368, 1.442695
        %v370 = vpow.pop %v369
        %v371 = vmul.f32 %v345, %v370
        %v372 = vld [vmem:[#allocation2] sm:$0x1]
        %v373 = vsub.f32 %v283, %v372
        %v374 = vand.u32 2147483647, %v373
        %v375 = vadd.f32 %v374, 0.0
        %v376 = vld [vmem:[#allocation3] sm:$0x1]
        %v377 = vld [vmem:[#allocation3 + $0x1] sm:$0x1]
        %v378 = vld [vmem:[#allocation3 + $0x2] sm:$0x1]
        %v379 = vsub.f32 %v284, %v376
        %v380 = vsub.f32 %v285, %v377
        %v381 = vsub.f32 %v286, %v378
        %v382 = vand.u32 2147483647, %v379
        %v383 = vand.u32 2147483647, %v380
        %v384 = vand.u32 2147483647, %v381
        %v385 = vsel %vm361, %v382, 0.0
        %v386 = vsel %vm361, %v383, 0.0
        %v387 = vadd.f32 %v385, %v386
        %v388 = vsel %vm361, %v384, 0.0
        %v389 = vadd.f32 %v387, %v388
        %v390 = vmul.f32 %v389, %v315
        %v391 = vsub.f32 0.0, %v390
        %v392 = vmul.f32 %v391, 1.442695
        %v393 = vpow.pop %v392
        %v394 = vmul.f32 %v375, %v393
        %v395 = vsub.f32 %v394, %v371
        %396 = vst [vmem:[#allocation2 - $0x7] sm:$0x80] %v283
        %397 = vst [vmem:[#allocation3 - $0x7] sm:$0x80] %v284
        %398 = vst [vmem:[#allocation3 - $0x6] sm:$0x80] %v285
        %399 = vst [vmem:[#allocation3 - $0x5] sm:$0x80] %v286
        %v400 = vadd.f32 %v320, 0.0
        %v401 = vadd.f32 %v339, 0.0
        %v402 = vlaneseq
        %v403 = vshrl.u32 %v402, 7
        %vm404 = vcmp.eq.s32.totalorder %v403, 0
        %v405 = vlaneseq
        %v406 = vshrl.u32 %v405, 7
        %v407 = vsub.s32 0, %v406
        %v408 = vrot.slane %v395, %v407
        %v409 = vsel %vm404, %v408, 0.0
        %v410 = vadd.f32 %v401, %v409
        %v411 = vld [vmem:[%s271] sm:$0xff]
        %v412 = vadd.f32 %v411, %v400
        %413 = vst [vmem:[%s271] sm:$0xff] %v412
        %v414 = vld [vmem:[%s278] sm:$0xff]
        %v415 = vadd.f32 %v414, %v410
        %416 = vst [vmem:[%s278] sm:$0xff] %v415
        %s417 = sand.u32 %s120, 1
        %s418 = scalar_lea.sflag [#allocation6], %s417
        %s419 = sand.u32 %s120, 1
        %s420 = smul.addr %s419, 8
        %s421 = scalar_lea.vmem [#allocation9], %s420
        %s422 = sand.u32 %s148, 1
        %s423 = scalar_lea.sflag [#allocation11], %s422
        %s424 = sand.u32 %s148, 1
        %s425 = smul.addr %s424, 8
        %s426 = scalar_lea.vmem [#allocation10], %s425
        // Predicated region
        $region41: #{tpu_custom_call.1} parent=27 // pred_check
          %p427 = pneg %p130
        $region42: #{tpu_custom_call.1} parent=27 // pred_check_branch
          %429 = sbr.rel (%p427) target = $region44
        $region43: #{tpu_custom_call.1} parent=27 // pred_region
          %s431 = ssub.s32 128, 128
          %432 = vsyncadd %s418, %s431
          %s433 = sadd.s32 %s33, %s32
          %s434 = smul.addr %s433, 128
          %s435 = scalar_lea.hbm %s2, %s434
          %s437 = sshll.u32 %s421, 4
          %s438 = int_to_ptr.vmem [resolvable:$true] %s437
          %440 = dma.vmem_to_hbm [thread:$0]  %s438, 128, %s435, %s418
        $region44: #{tpu_custom_call.1} parent=27 // pred_fallthru
          _
        // Predicated region
        $region45: #{tpu_custom_call.1} parent=27 // pred_check
          %p441 = pneg %p158
        $region46: #{tpu_custom_call.1} parent=27 // pred_check_branch
          %443 = sbr.rel (%p441) target = $region48
        $region47: #{tpu_custom_call.1} parent=27 // pred_region
          %s445 = ssub.s32 128, 128
          %446 = vsyncadd %s423, %s445
          %s447 = sadd.s32 %s33, %s32
          %s448 = smul.addr %s447, 128
          %s449 = scalar_lea.hbm %s3, %s448
          %s451 = sshll.u32 %s426, 4
          %s452 = int_to_ptr.vmem [resolvable:$true] %s451
          %454 = dma.vmem_to_hbm [thread:$0]  %s452, 128, %s449, %s423
        $region48: #{tpu_custom_call.1} parent=27 // pred_fallthru
          _
      $region28: #{tpu_custom_call.1} parent=5 // pred_fallthru
        _
      %p455 = scmp.le.s32.totalorder 2, %s22
      // Predicated region
      $region49: #{tpu_custom_call.1} parent=5 // pred_check
        %p456 = pneg %p455
      $region50: #{tpu_custom_call.1} parent=5 // pred_check_branch
        %458 = sbr.rel (%p456) target = $region52
      $region51: #{tpu_custom_call.1} parent=5 // pred_region
        %s459 = ssub.s32 %s22, 2
        // Predicated region
        $region53: #{tpu_custom_call.1} parent=51 // pred_check
          %p460 = pneg %p136
        $region54: #{tpu_custom_call.1} parent=51 // pred_check_branch
          %462 = sbr.rel (%p460) target = $region56
        $region55: #{tpu_custom_call.1} parent=51 // pred_region
          %s463 = sand.u32 %s121, 1
          %s464 = scalar_lea.sflag [#allocation6], %s463
          %s465 = sand.u32 %s121, 1
          %s466 = smul.addr %s465, 8
          %s467 = scalar_lea.vmem [#allocation9], %s466
          %468 = dma.done %s464, 128
        $region56: #{tpu_custom_call.1} parent=51 // pred_fallthru
          _
        // Predicated region
        $region57: #{tpu_custom_call.1} parent=51 // pred_check
          %p469 = pneg %p164
        $region58: #{tpu_custom_call.1} parent=51 // pred_check_branch
          %471 = sbr.rel (%p469) target = $region60
        $region59: #{tpu_custom_call.1} parent=51 // pred_region
          %s472 = sand.u32 %s149, 1
          %s473 = scalar_lea.sflag [#allocation11], %s472
          %s474 = sand.u32 %s149, 1
          %s475 = smul.addr %s474, 8
          %s476 = scalar_lea.vmem [#allocation10], %s475
          %477 = dma.done %s473, 128
        $region60: #{tpu_custom_call.1} parent=51 // pred_fallthru
          _
      $region52: #{tpu_custom_call.1} parent=5 // pred_fallthru
        _
    $region6: #{tpu_custom_call.1} parent=1 // loop_footer
      %s26 = sadd.s32 1, %s22
    $region7: #{tpu_custom_call.1} parent=1 // loop_footer_branch
      %21 = sbr.rel target = $region3
    $region8: #{tpu_custom_call.1} parent=1 // loop_exit
      _
    %478 = vsyncpa [#allocation5], 1
    %s479 = scalar_lea.sflag [#allocation5], 1
    %480 = vsyncpa %s479, 1
    %481 = vsyncpa [#allocation8], 1
    %s482 = scalar_lea.sflag [#allocation8], 1
    %483 = vsyncpa %s482, 1
    %484 = vsyncpa [#allocation6], 1
    %s485 = scalar_lea.sflag [#allocation6], 1
    %486 = vsyncpa %s485, 1
    %487 = vsyncpa [#allocation11], 1
    %s488 = scalar_lea.sflag [#allocation11], 1
    %489 = vsyncpa %s488, 1

</llo_original>
